<compile_context>
chip_gen: v6e
topology: v6e:2x2x1
jax: 0.10.0
libtpu: 0.0.40
codegen_flags: <defaults>
</compile_context>

<pallas_src>
import jax
import jax.numpy as jnp
from jax.experimental import pallas as pl
from jax.experimental.pallas import tpu as pltpu


TM_MAX = 512  # max lane tile over M = B*Ho*Wo (multiple of 128, ~85% roofline)

_COMPILER_PARAMS = pltpu.CompilerParams(
    dimension_semantics=("parallel",),   # M tiles are independent
    vmem_limit_bytes=32 * 1024 * 1024,   # explicit; leaves headroom on v7x (64 MiB)
)


# ----------------------------- Pallas kernels ------------------------------ #

def _conv_bn_relu_kernel(w_ref, p_ref, b_ref, o_ref):
    """o = relu(W @ P + b).

    W:(Cout, K) bf16 (BN scale pre-folded), P:(K, TM) bf16 im2col patches
    (lane-dense), b:(Cout, 1) f32, o:(Cout, TM).
    """
    acc = jnp.dot(w_ref[...], p_ref[...], preferred_element_type=jnp.float32)
    o_ref[...] = jnp.maximum(acc + b_ref[...], 0.0).astype(o_ref.dtype)


def _fused_tail_kernel(w0_ref, p0_ref, b0_ref, w1_ref, p1_ref, b1_ref,
                       pp_ref, o_ref):
    """branch0 final conv + branch1 conv + maxpool + channel concat, one store.

    p0:(K0, TM), p1:(K1, TM) bf16 patches; pp:(taps, Cin, TM) f32 (-inf padded);
    o:(C0 + C1 + Cin, TM) f32  == torch.cat((x0, x1, xp), dim=1) for this tile.
    """
    y0 = jnp.maximum(
        jnp.dot(w0_ref[...], p0_ref[...], preferred_element_type=jnp.float32)
        + b0_ref[...], 0.0)
    y1 = jnp.maximum(
        jnp.dot(w1_ref[...], p1_ref[...], preferred_element_type=jnp.float32)
        + b1_ref[...], 0.0)
    # MaxPool2d(3, stride=2, pad=1): unrolled VPU max chain over the tap axis.
    yp = pp_ref[0]
    for t in range(1, pp_ref.shape[0]):
        yp = jnp.maximum(yp, pp_ref[t])
    o_ref[...] = jnp.concatenate([y0, y1, yp], axis=0).astype(o_ref.dtype)


# ------------------------------- glue helpers ------------------------------ #

def _tile_m(m):
    """Largest lane tile (<= TM_MAX, multiple of 128) covering the padded M."""
    padded = ((m + 127) // 128) * 128
    return min(padded, TM_MAX)


def _pad_lanes(a, multiple):
    pad = (-a.shape[-1]) % multiple
    if pad:
        a = jnp.pad(a, [(0, 0)] * (a.ndim - 1) + [(0, pad)])
    return a


def _conv_patches(x, ksize, stride, pad, dtype=jnp.bfloat16):
    """x:(C, B, H, W) -> im2col (C*k*k, B*Ho*Wo); K order (ci, i, j) matches
    torch weight.reshape(Cout, Cin*k*k)."""
    c, b, h, w = x.shape
    xp = jnp.pad(x, ((0, 0), (0, 0), (pad, pad), (pad, pad)))
    ho = (h + 2 * pad - ksize) // stride + 1
    wo = (w + 2 * pad - ksize) // stride + 1
    slabs = [xp[:, :, i:i + stride * (ho - 1) + 1:stride,
                      j:j + stride * (wo - 1) + 1:stride]
             for i in range(ksize) for j in range(ksize)]
    p = jnp.stack(slabs, axis=1)                      # (C, k*k, B, Ho, Wo)
    return p.reshape(c * ksize * ksize, b * ho * wo).astype(dtype), ho, wo


def _pool_patches(x, ksize, stride, pad):
    """x:(C, B, H, W) -> (k*k, C, B*Ho*Wo) windows, -inf padded (PyTorch maxpool)."""
    c, b, h, w = x.shape
    xp = jnp.pad(x, ((0, 0), (0, 0), (pad, pad), (pad, pad)),
                 constant_values=-jnp.inf)
    ho = (h + 2 * pad - ksize) // stride + 1
    wo = (w + 2 * pad - ksize) // stride + 1
    slabs = [xp[:, :, i:i + stride * (ho - 1) + 1:stride,
                      j:j + stride * (wo - 1) + 1:stride]
             for i in range(ksize) for j in range(ksize)]
    p = jnp.stack(slabs, axis=0)                      # (k*k, C, B, Ho, Wo)
    return p.reshape(ksize * ksize, c, b * ho * wo), ho, wo


def conv_bn_relu(x, w2, bias, *, ksize, stride, pad, out_dtype=jnp.bfloat16):
    """ConvBlock (Conv2d bias=False + folded BN + ReLU) on a (C, B, H, W) input."""
    _, b, _, _ = x.shape
    cout, k = w2.shape
    p, ho, wo = _conv_patches(x, ksize, stride, pad)
    m = b * ho * wo
    tm = _tile_m(m)
    p = _pad_lanes(p, tm)
    mp = p.shape[-1]
    grid_m = mp // tm

    out = pl.pallas_call(
        _conv_bn_relu_kernel,
        out_shape=jax.ShapeDtypeStruct((cout, mp), out_dtype),
        grid=(grid_m,),
        in_specs=[
            pl.BlockSpec((cout, k), lambda i: (0, 0)),   # resident folded weights
            pl.BlockSpec((k, tm), lambda i: (0, i)),     # lane-dense patch tile
            pl.BlockSpec((cout, 1), lambda i: (0, 0)),   # resident bias
        ],
        out_specs=pl.BlockSpec((cout, tm), lambda i: (0, i)),
        compiler_params=_COMPILER_PARAMS,
        cost_estimate=pl.CostEstimate(
            flops=2 * cout * k * mp, transcendentals=0,
            bytes_accessed=(cout * k + k * mp) * 2 + cout * mp * 2),
    )(w2, p, bias)
    return out[:, :m].reshape(cout, b, ho, wo)


def reduction_tail(x, t0, p_b0_2, p_b1):
    """Fused: branch0 final conv (on t0) + branch1 conv (on x) + maxpool(x) + cat."""
    cin, b, _, _ = x.shape
    w0, b0 = p_b0_2
    w1, b1 = p_b1
    c0, k0 = w0.shape
    c1, k1 = w1.shape

    p0, ho, wo = _conv_patches(t0, 3, 2, 2)    # branch0 tail: k=3, stride=2, pad=2
    p1, ho1, wo1 = _conv_patches(x, 3, 2, 1)   # branch1:      k=3, stride=2, pad=1
    pp, ho2, wo2 = _pool_patches(x, 3, 2, 1)   # branchpool:   k=3, stride=2, pad=1
    assert (ho, wo) == (ho1, wo1) == (ho2, wo2)

    m = b * ho * wo
    tm = _tile_m(m)
    p0 = _pad_lanes(p0, tm)
    p1 = _pad_lanes(p1, tm)
    pp = _pad_lanes(pp, tm)
    mp = p0.shape[-1]
    grid_m = mp // tm
    ctot = c0 + c1 + cin

    out = pl.pallas_call(
        _fused_tail_kernel,
        out_shape=jax.ShapeDtypeStruct((ctot, mp), jnp.float32),
        grid=(grid_m,),
        in_specs=[
            pl.BlockSpec((c0, k0), lambda i: (0, 0)),
            pl.BlockSpec((k0, tm), lambda i: (0, i)),
            pl.BlockSpec((c0, 1), lambda i: (0, 0)),
            pl.BlockSpec((c1, k1), lambda i: (0, 0)),
            pl.BlockSpec((k1, tm), lambda i: (0, i)),
            pl.BlockSpec((c1, 1), lambda i: (0, 0)),
            pl.BlockSpec((9, cin, tm), lambda i: (0, 0, i)),
        ],
        out_specs=pl.BlockSpec((ctot, tm), lambda i: (0, i)),
        compiler_params=_COMPILER_PARAMS,
        cost_estimate=pl.CostEstimate(
            flops=2 * (c0 * k0 + c1 * k1) * mp, transcendentals=0,
            bytes_accessed=((k0 + k1) * mp * 2 + 9 * cin * mp * 4
                            + ctot * mp * 4)),
    )(w0, p0, b0, w1, p1, b1, pp)
    return out[:, :m].reshape(ctot, b, ho, wo)


# ------------------------------ parameter setup ----------------------------- #

def make_convblock_params(key, cout, cin, ksize):
    """Conv2d(bias=False) weight + inference-mode BatchNorm folded to (W', b)."""
    k1, k2, k3, k4, k5 = jax.random.split(key, 5)
    w = jax.random.normal(k1, (cout, cin, ksize, ksize), jnp.float32)
    w = w * (1.0 / float(cin * ksize * ksize) ** 0.5)
    gamma = 1.0 + 0.1 * jax.random.normal(k2, (cout,), jnp.float32)
    beta = 0.1 * jax.random.normal(k3, (cout,), jnp.float32)
    mean = 0.1 * jax.random.normal(k4, (cout,), jnp.float32)
    var = 0.5 + jax.random.uniform(k5, (cout,), jnp.float32)
    scale = gamma / jnp.sqrt(var + 1e-5)
    w_folded = (w.reshape(cout, -1) * scale[:, None]).astype(jnp.bfloat16)
    bias = (beta - mean * scale).reshape(cout, 1).astype(jnp.float32)
    return w_folded, bias


def init_reduction_a_params(key, in_ch, out_ch):
    oc = out_ch - in_ch            # torch: outCh -= inCh
    c4, c3, c2 = oc // 4, oc // 3, oc // 2
    specs = {
        "b0_0": (c4, in_ch, 1),    # ConvBlock(inCh,  oc//4, kSize=1)
        "b0_1": (c3, c4, 3),       # ConvBlock(oc//4, oc//3, kSize=3)
        "b0_2": (c2, c3, 3),       # ConvBlock(oc//3, oc//2, kSize=3, s=2, p=2)
        "b1":   (c2, in_ch, 3),    # ConvBlock(inCh,  oc//2, kSize=3, s=2, p=1)
    }
    keys = jax.random.split(key, len(specs))
    return {n: make_convblock_params(k, *s) for k, (n, s) in zip(keys, specs.items())}


# ------------------------------ ReductionA forward -------------------------- #

def reduction_a_forward(x_nchw, params):
    # NCHW -> channels-first (C, B, H, W): channels become the sublane/matmul-M
    # dim, the flattened B*H*W axis maps to TPU lanes (lane-dense everywhere).
    x = jnp.transpose(x_nchw, (1, 0, 2, 3)).astype(jnp.float32)

    # branch0 head: 1x1 conv -> 3x3 conv (pad 0); its final conv is fused below.
    t = conv_bn_relu(x, *params["b0_0"], ksize=1, stride=1, pad=0)
    t = conv_bn_relu(t, *params["b0_1"], ksize=3, stride=1, pad=0)

    # fused tail: branch0 final conv + branch1 + maxpool + torch.cat(dim=1)
    out = reduction_tail(x, t, params["b0_2"], params["b1"])

    # (Ctot, B, Ho, Wo) -> NCHW
    return jnp.transpose(out, (1, 0, 2, 3))


# ----------------------------------- main ----------------------------------- #

if __name__ == "__main__":
    IN_CH, OUT_CH = 4, 28      # (OUT_CH - IN_CH) = 24 splits evenly by 4, 3, 2
    B, H, W = 2, 16, 16

    root = jax.random.PRNGKey(0)
    k_x, k_p = jax.random.split(root)
    x = jax.random.normal(k_x, (B, IN_CH, H, W), jnp.float32)   # NCHW, like PyTorch
    params = init_reduction_a_params(k_p, IN_CH, OUT_CH)

    fwd = jax.jit(reduction_a_forward)
    y = jax.block_until_ready(fwd(x, params))

    # branch0: 16 -> 16 -> 14 -> 8 ; branch1/pool: 16 -> 8 ; channels 12+12+4 = 28
    assert y.shape == (B, OUT_CH, 8, 8), y.shape
    assert bool(jnp.all(jnp.isfinite(y)))
    print("KERNEL_OK")
</pallas_src>

<mosaic_0001>
module attributes {stable_mosaic.version = 11 : i64} {
  func.func @_conv_bn_relu_kernel(%arg0: i32, %arg1: memref<6x4xbf16, #tpu.memory_space<vmem>>, %arg2: memref<4x512xbf16, #tpu.memory_space<vmem>>, %arg3: memref<6x1xf32, #tpu.memory_space<vmem>>, %arg4: memref<6x512xbf16, #tpu.memory_space<vmem>>) attributes {dimension_semantics = [#tpu.dimension_semantics<parallel>], iteration_bounds = array<i64: 1>, scalar_prefetch = 0 : i64, scratch_operands = 0 : i64, tpu.core_type = #tpu.core_type<tc>, window_params = [{pipeline_mode = #tpu.pipeline_mode<synchronous>, transform_indices = @transform_0, window_bounds = array<i64: 6, 4>}, {transform_indices = @transform_1, window_bounds = array<i64: 4, 512>}, {pipeline_mode = #tpu.pipeline_mode<synchronous>, transform_indices = @transform_2, window_bounds = array<i64: 6, 1>}, {transform_indices = @transform_3, window_bounds = array<i64: 6, 512>}]} {
    %c0 = arith.constant 0 : index
    %c0_0 = arith.constant 0 : index
    %0 = vector.load %arg1[%c0, %c0_0] : memref<6x4xbf16, #tpu.memory_space<vmem>>, vector<6x4xbf16>
    %c0_1 = arith.constant 0 : index
    %c0_2 = arith.constant 0 : index
    %1 = vector.load %arg2[%c0_1, %c0_2] : memref<4x512xbf16, #tpu.memory_space<vmem>>, vector<4x512xbf16>
    %cst = arith.constant dense<0.000000e+00> : vector<6x512xf32>
    %2 = tpu.matmul %0, %1, %cst {dimension_numbers = #tpu.dot_dimension_numbers<[1], [0], [0], [1], [0, 0, 1, 1], [], []>} : vector<6x4xbf16>, vector<4x512xbf16>, vector<6x512xf32> -> vector<6x512xf32>
    %c0_3 = arith.constant 0 : index
    %c0_4 = arith.constant 0 : index
    %3 = vector.load %arg3[%c0_3, %c0_4] : memref<6x1xf32, #tpu.memory_space<vmem>>, vector<6x1xf32>
    %4 = vector.broadcast %3 : vector<6x1xf32> to vector<6x512xf32>
    %5 = arith.addf %2, %4 : vector<6x512xf32>
    %cst_5 = arith.constant 0.000000e+00 : f32
    %6 = vector.broadcast %cst_5 : f32 to vector<6x512xf32>
    %7 = arith.maximumf %5, %6 : vector<6x512xf32>
    %8 = arith.truncf %7 : vector<6x512xf32> to vector<6x512xbf16>
    %c0_6 = arith.constant 0 : index
    %c0_7 = arith.constant 0 : index
    %9 = vector.load %arg4[%c0_6, %c0_7] : memref<6x512xbf16, #tpu.memory_space<vmem>>, vector<6x512xbf16>
    tpu.vector_store %arg4[%c0_6, %c0_7], %8 {strides = array<i32>} : memref<6x512xbf16, #tpu.memory_space<vmem>>, vector<6x512xbf16>,
    return
  }
  func.func @transform_0(%arg0: i32) -> (i32, i32) {
    %c0_i32 = arith.constant 0 : i32
    %c0_i32_0 = arith.constant 0 : i32
    %c0_i32_1 = arith.constant 0 : i32
    return %c0_i32, %c0_i32_0 : i32, i32
  }
  func.func @transform_1(%arg0: i32) -> (i32, i32) {
    %c0_i32 = arith.constant 0 : i32
    %c0_i32_0 = arith.constant 0 : i32
    return %c0_i32, %arg0 : i32, i32
  }
  func.func @transform_2(%arg0: i32) -> (i32, i32) {
    %c0_i32 = arith.constant 0 : i32
    %c0_i32_0 = arith.constant 0 : i32
    %c0_i32_1 = arith.constant 0 : i32
    return %c0_i32, %c0_i32_0 : i32, i32
  }
  func.func @transform_3(%arg0: i32) -> (i32, i32) {
    %c0_i32 = arith.constant 0 : i32
    %c0_i32_0 = arith.constant 0 : i32
    return %c0_i32, %arg0 : i32, i32
  }
}

module attributes {stable_mosaic.version = 11 : i64} {
  func.func @_conv_bn_relu_kernel(%arg0: i32, %arg1: memref<8x54xbf16, #tpu.memory_space<vmem>>, %arg2: memref<54x512xbf16, #tpu.memory_space<vmem>>, %arg3: memref<8x1xf32, #tpu.memory_space<vmem>>, %arg4: memref<8x512xbf16, #tpu.memory_space<vmem>>) attributes {dimension_semantics = [#tpu.dimension_semantics<parallel>], iteration_bounds = array<i64: 1>, scalar_prefetch = 0 : i64, scratch_operands = 0 : i64, tpu.core_type = #tpu.core_type<tc>, window_params = [{pipeline_mode = #tpu.pipeline_mode<synchronous>, transform_indices = @transform_0, window_bounds = array<i64: 8, 54>}, {transform_indices = @transform_1, window_bounds = array<i64: 54, 512>}, {pipeline_mode = #tpu.pipeline_mode<synchronous>, transform_indices = @transform_2, window_bounds = array<i64: 8, 1>}, {transform_indices = @transform_3, window_bounds = array<i64: 8, 512>}]} {
    %c0 = arith.constant 0 : index
    %c0_0 = arith.constant 0 : index
    %0 = vector.load %arg1[%c0, %c0_0] : memref<8x54xbf16, #tpu.memory_space<vmem>>, vector<8x54xbf16>
    %c0_1 = arith.constant 0 : index
    %c0_2 = arith.constant 0 : index
    %1 = vector.load %arg2[%c0_1, %c0_2] : memref<54x512xbf16, #tpu.memory_space<vmem>>, vector<54x512xbf16>
    %cst = arith.constant dense<0.000000e+00> : vector<8x512xf32>
    %2 = tpu.matmul %0, %1, %cst {dimension_numbers = #tpu.dot_dimension_numbers<[1], [0], [0], [1], [0, 0, 1, 1], [], []>} : vector<8x54xbf16>, vector<54x512xbf16>, vector<8x512xf32> -> vector<8x512xf32>
    %c0_3 = arith.constant 0 : index
    %c0_4 = arith.constant 0 : index
    %3 = vector.load %arg3[%c0_3, %c0_4] : memref<8x1xf32, #tpu.memory_space<vmem>>, vector<8x1xf32>
    %4 = vector.broadcast %3 : vector<8x1xf32> to vector<8x512xf32>
    %5 = arith.addf %2, %4 : vector<8x512xf32>
    %cst_5 = arith.constant 0.000000e+00 : f32
    %6 = vector.broadcast %cst_5 : f32 to vector<8x512xf32>
    %7 = arith.maximumf %5, %6 : vector<8x512xf32>
    %8 = arith.truncf %7 : vector<8x512xf32> to vector<8x512xbf16>
    %c0_6 = arith.constant 0 : index
    %c0_7 = arith.constant 0 : index
    %9 = vector.load %arg4[%c0_6, %c0_7] : memref<8x512xbf16, #tpu.memory_space<vmem>>, vector<8x512xbf16>
    tpu.vector_store %arg4[%c0_6, %c0_7], %8 {strides = array<i32>} : memref<8x512xbf16, #tpu.memory_space<vmem>>, vector<8x512xbf16>,
    return
  }
  func.func @transform_0(%arg0: i32) -> (i32, i32) {
    %c0_i32 = arith.constant 0 : i32
    %c0_i32_0 = arith.constant 0 : i32
    %c0_i32_1 = arith.constant 0 : i32
    return %c0_i32, %c0_i32_0 : i32, i32
  }
  func.func @transform_1(%arg0: i32) -> (i32, i32) {
    %c0_i32 = arith.constant 0 : i32
    %c0_i32_0 = arith.constant 0 : i32
    return %c0_i32, %arg0 : i32, i32
  }
  func.func @transform_2(%arg0: i32) -> (i32, i32) {
    %c0_i32 = arith.constant 0 : i32
    %c0_i32_0 = arith.constant 0 : i32
    %c0_i32_1 = arith.constant 0 : i32
    return %c0_i32, %c0_i32_0 : i32, i32
  }
  func.func @transform_3(%arg0: i32) -> (i32, i32) {
    %c0_i32 = arith.constant 0 : i32
    %c0_i32_0 = arith.constant 0 : i32
    return %c0_i32, %arg0 : i32, i32
  }
}

module attributes {stable_mosaic.version = 11 : i64} {
  func.func @_fused_tail_kernel(%arg0: i32, %arg1: memref<12x72xbf16, #tpu.memory_space<vmem>>, %arg2: memref<72x128xbf16, #tpu.memory_space<vmem>>, %arg3: memref<12x1xf32, #tpu.memory_space<vmem>>, %arg4: memref<12x36xbf16, #tpu.memory_space<vmem>>, %arg5: memref<36x128xbf16, #tpu.memory_space<vmem>>, %arg6: memref<12x1xf32, #tpu.memory_space<vmem>>, %arg7: memref<9x4x128xf32, #tpu.memory_space<vmem>>, %arg8: memref<28x128xf32, #tpu.memory_space<vmem>>) attributes {dimension_semantics = [#tpu.dimension_semantics<parallel>], iteration_bounds = array<i64: 1>, scalar_prefetch = 0 : i64, scratch_operands = 0 : i64, tpu.core_type = #tpu.core_type<tc>, window_params = [{pipeline_mode = #tpu.pipeline_mode<synchronous>, transform_indices = @transform_0, window_bounds = array<i64: 12, 72>}, {transform_indices = @transform_1, window_bounds = array<i64: 72, 128>}, {pipeline_mode = #tpu.pipeline_mode<synchronous>, transform_indices = @transform_2, window_bounds = array<i64: 12, 1>}, {pipeline_mode = #tpu.pipeline_mode<synchronous>, transform_indices = @transform_3, window_bounds = array<i64: 12, 36>}, {transform_indices = @transform_4, window_bounds = array<i64: 36, 128>}, {pipeline_mode = #tpu.pipeline_mode<synchronous>, transform_indices = @transform_5, window_bounds = array<i64: 12, 1>}, {transform_indices = @transform_6, window_bounds = array<i64: 9, 4, 128>}, {transform_indices = @transform_7, window_bounds = array<i64: 28, 128>}]} {
    %c0 = arith.constant 0 : index
    %c0_0 = arith.constant 0 : index
    %0 = vector.load %arg1[%c0, %c0_0] : memref<12x72xbf16, #tpu.memory_space<vmem>>, vector<12x72xbf16>
    %c0_1 = arith.constant 0 : index
    %c0_2 = arith.constant 0 : index
    %1 = vector.load %arg2[%c0_1, %c0_2] : memref<72x128xbf16, #tpu.memory_space<vmem>>, vector<72x128xbf16>
    %cst = arith.constant dense<0.000000e+00> : vector<12x128xf32>
    %2 = tpu.matmul %0, %1, %cst {dimension_numbers = #tpu.dot_dimension_numbers<[1], [0], [0], [1], [0, 0, 1, 1], [], []>} : vector<12x72xbf16>, vector<72x128xbf16>, vector<12x128xf32> -> vector<12x128xf32>
    %c0_3 = arith.constant 0 : index
    %c0_4 = arith.constant 0 : index
    %3 = vector.load %arg3[%c0_3, %c0_4] : memref<12x1xf32, #tpu.memory_space<vmem>>, vector<12x1xf32>
    %4 = vector.broadcast %3 : vector<12x1xf32> to vector<12x128xf32>
    %5 = arith.addf %2, %4 : vector<12x128xf32>
    %cst_5 = arith.constant 0.000000e+00 : f32
    %6 = vector.broadcast %cst_5 : f32 to vector<12x128xf32>
    %7 = arith.maximumf %5, %6 : vector<12x128xf32>
    %c0_6 = arith.constant 0 : index
    %c0_7 = arith.constant 0 : index
    %8 = vector.load %arg4[%c0_6, %c0_7] : memref<12x36xbf16, #tpu.memory_space<vmem>>, vector<12x36xbf16>
    %c0_8 = arith.constant 0 : index
    %c0_9 = arith.constant 0 : index
    %9 = vector.load %arg5[%c0_8, %c0_9] : memref<36x128xbf16, #tpu.memory_space<vmem>>, vector<36x128xbf16>
    %cst_10 = arith.constant dense<0.000000e+00> : vector<12x128xf32>
    %10 = tpu.matmul %8, %9, %cst_10 {dimension_numbers = #tpu.dot_dimension_numbers<[1], [0], [0], [1], [0, 0, 1, 1], [], []>} : vector<12x36xbf16>, vector<36x128xbf16>, vector<12x128xf32> -> vector<12x128xf32>
    %c0_11 = arith.constant 0 : index
    %c0_12 = arith.constant 0 : index
    %11 = vector.load %arg6[%c0_11, %c0_12] : memref<12x1xf32, #tpu.memory_space<vmem>>, vector<12x1xf32>
    %12 = vector.broadcast %11 : vector<12x1xf32> to vector<12x128xf32>
    %13 = arith.addf %10, %12 : vector<12x128xf32>
    %cst_13 = arith.constant 0.000000e+00 : f32
    %14 = vector.broadcast %cst_13 : f32 to vector<12x128xf32>
    %15 = arith.maximumf %13, %14 : vector<12x128xf32>
    %c0_14 = arith.constant 0 : index
    %c0_15 = arith.constant 0 : index
    %c0_16 = arith.constant 0 : index
    %16 = vector.load %arg7[%c0_14, %c0_15, %c0_16] : memref<9x4x128xf32, #tpu.memory_space<vmem>>, vector<1x4x128xf32>
    %17 = vector.shape_cast %16 : vector<1x4x128xf32> to vector<4x128xf32>
    %c1 = arith.constant 1 : index
    %c0_17 = arith.constant 0 : index
    %c0_18 = arith.constant 0 : index
    %18 = vector.load %arg7[%c1, %c0_17, %c0_18] : memref<9x4x128xf32, #tpu.memory_space<vmem>>, vector<1x4x128xf32>
    %19 = vector.shape_cast %18 : vector<1x4x128xf32> to vector<4x128xf32>
    %20 = arith.maximumf %17, %19 : vector<4x128xf32>
    %c2 = arith.constant 2 : index
    %c0_19 = arith.constant 0 : index
    %c0_20 = arith.constant 0 : index
    %21 = vector.load %arg7[%c2, %c0_19, %c0_20] : memref<9x4x128xf32, #tpu.memory_space<vmem>>, vector<1x4x128xf32>
    %22 = vector.shape_cast %21 : vector<1x4x128xf32> to vector<4x128xf32>
    %23 = arith.maximumf %20, %22 : vector<4x128xf32>
    %c3 = arith.constant 3 : index
    %c0_21 = arith.constant 0 : index
    %c0_22 = arith.constant 0 : index
    %24 = vector.load %arg7[%c3, %c0_21, %c0_22] : memref<9x4x128xf32, #tpu.memory_space<vmem>>, vector<1x4x128xf32>
    %25 = vector.shape_cast %24 : vector<1x4x128xf32> to vector<4x128xf32>
    %26 = arith.maximumf %23, %25 : vector<4x128xf32>
    %c4 = arith.constant 4 : index
    %c0_23 = arith.constant 0 : index
    %c0_24 = arith.constant 0 : index
    %27 = vector.load %arg7[%c4, %c0_23, %c0_24] : memref<9x4x128xf32, #tpu.memory_space<vmem>>, vector<1x4x128xf32>
    %28 = vector.shape_cast %27 : vector<1x4x128xf32> to vector<4x128xf32>
    %29 = arith.maximumf %26, %28 : vector<4x128xf32>
    %c5 = arith.constant 5 : index
    %c0_25 = arith.constant 0 : index
    %c0_26 = arith.constant 0 : index
    %30 = vector.load %arg7[%c5, %c0_25, %c0_26] : memref<9x4x128xf32, #tpu.memory_space<vmem>>, vector<1x4x128xf32>
    %31 = vector.shape_cast %30 : vector<1x4x128xf32> to vector<4x128xf32>
    %32 = arith.maximumf %29, %31 : vector<4x128xf32>
    %c6 = arith.constant 6 : index
    %c0_27 = arith.constant 0 : index
    %c0_28 = arith.constant 0 : index
    %33 = vector.load %arg7[%c6, %c0_27, %c0_28] : memref<9x4x128xf32, #tpu.memory_space<vmem>>, vector<1x4x128xf32>
    %34 = vector.shape_cast %33 : vector<1x4x128xf32> to vector<4x128xf32>
    %35 = arith.maximumf %32, %34 : vector<4x128xf32>
    %c7 = arith.constant 7 : index
    %c0_29 = arith.constant 0 : index
    %c0_30 = arith.constant 0 : index
    %36 = vector.load %arg7[%c7, %c0_29, %c0_30] : memref<9x4x128xf32, #tpu.memory_space<vmem>>, vector<1x4x128xf32>
    %37 = vector.shape_cast %36 : vector<1x4x128xf32> to vector<4x128xf32>
    %38 = arith.maximumf %35, %37 : vector<4x128xf32>
    %c8 = arith.constant 8 : index
    %c0_31 = arith.constant 0 : index
    %c0_32 = arith.constant 0 : index
    %39 = vector.load %arg7[%c8, %c0_31, %c0_32] : memref<9x4x128xf32, #tpu.memory_space<vmem>>, vector<1x4x128xf32>
    %40 = vector.shape_cast %39 : vector<1x4x128xf32> to vector<4x128xf32>
    %41 = arith.maximumf %38, %40 : vector<4x128xf32>
    %42 = tpu.concatenate %7, %15, %41 in 0 : vector<12x128xf32>, vector<12x128xf32>, vector<4x128xf32> -> vector<28x128xf32>
    %c0_33 = arith.constant 0 : index
    %c0_34 = arith.constant 0 : index
    %43 = vector.load %arg8[%c0_33, %c0_34] : memref<28x128xf32, #tpu.memory_space<vmem>>, vector<28x128xf32>
    tpu.vector_store %arg8[%c0_33, %c0_34], %42 {strides = array<i32>} : memref<28x128xf32, #tpu.memory_space<vmem>>, vector<28x128xf32>,
    return
  }
  func.func @transform_0(%arg0: i32) -> (i32, i32) {
    %c0_i32 = arith.constant 0 : i32
    %c0_i32_0 = arith.constant 0 : i32
    %c0_i32_1 = arith.constant 0 : i32
    return %c0_i32, %c0_i32_0 : i32, i32
  }
  func.func @transform_1(%arg0: i32) -> (i32, i32) {
    %c0_i32 = arith.constant 0 : i32
    %c0_i32_0 = arith.constant 0 : i32
    return %c0_i32, %arg0 : i32, i32
  }
  func.func @transform_2(%arg0: i32) -> (i32, i32) {
    %c0_i32 = arith.constant 0 : i32
    %c0_i32_0 = arith.constant 0 : i32
    %c0_i32_1 = arith.constant 0 : i32
    return %c0_i32, %c0_i32_0 : i32, i32
  }
  func.func @transform_3(%arg0: i32) -> (i32, i32) {
    %c0_i32 = arith.constant 0 : i32
    %c0_i32_0 = arith.constant 0 : i32
    %c0_i32_1 = arith.constant 0 : i32
    return %c0_i32, %c0_i32_0 : i32, i32
  }
  func.func @transform_4(%arg0: i32) -> (i32, i32) {
    %c0_i32 = arith.constant 0 : i32
    %c0_i32_0 = arith.constant 0 : i32
    return %c0_i32, %arg0 : i32, i32
  }
  func.func @transform_5(%arg0: i32) -> (i32, i32) {
    %c0_i32 = arith.constant 0 : i32
    %c0_i32_0 = arith.constant 0 : i32
    %c0_i32_1 = arith.constant 0 : i32
    return %c0_i32, %c0_i32_0 : i32, i32
  }
  func.func @transform_6(%arg0: i32) -> (i32, i32, i32) {
    %c0_i32 = arith.constant 0 : i32
    %c0_i32_0 = arith.constant 0 : i32
    %c0_i32_1 = arith.constant 0 : i32
    return %c0_i32, %c0_i32_0, %arg0 : i32, i32, i32
  }
  func.func @transform_7(%arg0: i32) -> (i32, i32) {
    %c0_i32 = arith.constant 0 : i32
    %c0_i32_0 = arith.constant 0 : i32
    return %c0_i32, %arg0 : i32, i32
  }
}

</mosaic_0001>

<llo_original>
// kernel: reduction_a_forward.3
$region0: #{reduction_a_forward.3}
  #allocation0 [shape = 'u32[]', space=smem, size = 0x4, offset = 0x4, fixed_abs, tag = 'smem constant byte address 0x4 - core index']
  #allocation1 [shape = 'u32[144,128]{1,0:T(1,128)}', space=vmem, size = 0x12000, scoped, tag = 'internal scratch']
  %s0 = inlined_call_operand.vmem [shape: bf16[6,4], index: 0, kind: input, shape index: {}]
  %s1 = inlined_call_operand.vmem [shape: bf16[4,512], index: 1, kind: input, shape index: {}]
  %s2 = inlined_call_operand.vmem [shape: f32[6,1], index: 2, kind: input, shape index: {}]
  %s3 = inlined_call_operand.vmem [shape: bf16[6,512], index: 3, kind: output, shape index: {}]
  %s4 = sld [smem:[#allocation0]]
  $region22: #{reduction_a_forward.3} parent=0
    _
  %s6 = ssub.s32 1, %s4
  %s7 = scalar_select 0, %s6, %s4
  // Predicated region
  $region2: #{reduction_a_forward.3} parent=0 // pred_check
    _
  $region3: #{reduction_a_forward.3} parent=0 // pred_check_branch
    %9 = sbr.rel (0) target = $region5
  $region4: #{reduction_a_forward.3} parent=0 // pred_region
    _
  $region5: #{reduction_a_forward.3} parent=0 // pred_fallthru
    _
  // Predicated region
  $region6: #{reduction_a_forward.3} parent=0 // pred_check
    _
  $region7: #{reduction_a_forward.3} parent=0 // pred_check_branch
    %11 = sbr.rel (0) target = $region9
  $region8: #{reduction_a_forward.3} parent=0 // pred_region
    _
  $region9: #{reduction_a_forward.3} parent=0 // pred_fallthru
    _
  // Predicated region
  $region10: #{reduction_a_forward.3} parent=0 // pred_check
    _
  $region11: #{reduction_a_forward.3} parent=0 // pred_check_branch
    %13 = sbr.rel (0) target = $region13
  $region12: #{reduction_a_forward.3} parent=0 // pred_region
    _
  $region13: #{reduction_a_forward.3} parent=0 // pred_fallthru
    _
  %v15 = vld [vmem:[%s0] sm:$0x7]
  %v16 = vld [vmem:[%s1] sm:$0xff]
  %v17 = vld [vmem:[%s2] sm:$0x3f]
  %19 = vset.pattern.permute.xlu0 0
  %20 = vperm.xlu0 %19, %v17
  %v21 = vpop.permute.xlu0 %20
  %v24 = vcombine.high %v16, %v16
  %v26 = vunpack.c.l.s4 1983009808
  %v27 = vunpack.c.0.s8 %v26
  %v28 = vlaneseq
  %v29 = vshrl.u32 %v28, 7
  %v30 = vsub.s32 %v27, %v29
  %v31 = vrot.slane %v16, %v30
  %v33 = vunpack.c.l.s4 1983009808
  %v34 = vunpack.c.0.s8 %v33
  %v35 = vlaneseq
  %v36 = vshrl.u32 %v35, 7
  %v37 = vsub.s32 %v34, %v36
  %v38 = vrot.slane %v24, %v37
  %v39 = vcombine.high %v31, %v31
  %v40 = vcombine.high %v38, %v38
  %vm41 = vcmask 31744
  %v43 = vsel %vm41, %v15, 0
  %vm45 = vcmask 1041408
  %v47 = vsel %vm45, %v31, 0
  %v50 = vsel %vm45, %v39, 0
  %v53 = vsel %vm45, %v38, 0
  %v56 = vsel %vm45, %v40, 0
  %58 = vmatprep.subr.bf16.mxu0 0
  %59 = vmatpush1.bf16.msra.mxu0 0
  %60 = vmatprep.subr.bf16.mxu0 0
  %61 = vmatpush1.bf16.msra.mxu0 0
  %62 = vmatprep.subr.bf16.mxu0 0
  %63 = vmatpush1.bf16.msra.mxu0 0
  %64 = vmatprep.subr.bf16.mxu0 0
  %65 = vmatpush1.bf16.msra.mxu0 0
  %66 = vmatprep.subr.bf16.mxu0 0
  %67 = vmatpush1.bf16.msra.mxu0 0
  %68 = vmatprep.subr.bf16.mxu0 0
  %69 = vmatpush1.bf16.msra.mxu0 0
  %70 = vmatprep.subr.bf16.mxu0 0
  %71 = vmatpush1.bf16.msra.mxu0 0
  %72 = vmatprep.subr.bf16.mxu0 %v50
  %73 = vmatpush1.bf16.msra.mxu0 %v47
  %74 = vmatprep.subr.bf16.mxu0 0
  %75 = vmatpush2.bf16.msra.mxu0 0
  %76 = vmatprep.subr.bf16.mxu0 0
  %77 = vmatpush2.bf16.msra.mxu0 0
  %78 = vmatprep.subr.bf16.mxu0 0
  %79 = vmatpush2.bf16.msra.mxu0 0
  %80 = vmatprep.subr.bf16.mxu0 0
  %81 = vmatpush2.bf16.msra.mxu0 0
  %82 = vmatprep.subr.bf16.mxu0 0
  %83 = vmatpush2.bf16.msra.mxu0 0
  %84 = vmatprep.subr.bf16.mxu0 0
  %85 = vmatpush2.bf16.msra.mxu0 0
  %86 = vmatprep.subr.bf16.mxu0 0
  %87 = vmatpush2.bf16.msra.mxu0 0
  %88 = vmatprep.subr.bf16.mxu0 0
  %89 = vmatpush2.bf16.msra.mxu0 0
  %90 = vmatprep.mubr.bf16.mxu0 0
  %91 = vmatmul.mubr.bf16.gmra.mxu0 %v43
  %v92 = vpop.f32.mrf.mxu0
  %v93 = vadd.f32 %v21, %v92
  %v94 = vpop.f32.mrf.mxu0
  %v95 = vadd.f32 %v21, %v94
  %v96 = vpop.f32.mrf.mxu0
  %v97 = vpop.f32.mrf.mxu0
  %98 = vdwg.mxu0
  %99 = vmatprep.subr.bf16.mxu0 0
  %100 = vmatpush1.bf16.msra.mxu0 0
  %101 = vmatprep.subr.bf16.mxu0 0
  %102 = vmatpush1.bf16.msra.mxu0 0
  %103 = vmatprep.subr.bf16.mxu0 0
  %104 = vmatpush1.bf16.msra.mxu0 0
  %105 = vmatprep.subr.bf16.mxu0 0
  %106 = vmatpush1.bf16.msra.mxu0 0
  %107 = vmatprep.subr.bf16.mxu0 0
  %108 = vmatpush1.bf16.msra.mxu0 0
  %109 = vmatprep.subr.bf16.mxu0 0
  %110 = vmatpush1.bf16.msra.mxu0 0
  %111 = vmatprep.subr.bf16.mxu0 0
  %112 = vmatpush1.bf16.msra.mxu0 0
  %113 = vmatprep.subr.bf16.mxu0 %v56
  %114 = vmatpush1.bf16.msra.mxu0 %v53
  %115 = vmatprep.subr.bf16.mxu0 0
  %116 = vmatpush2.bf16.msra.mxu0 0
  %117 = vmatprep.subr.bf16.mxu0 0
  %118 = vmatpush2.bf16.msra.mxu0 0
  %119 = vmatprep.subr.bf16.mxu0 0
  %120 = vmatpush2.bf16.msra.mxu0 0
  %121 = vmatprep.subr.bf16.mxu0 0
  %122 = vmatpush2.bf16.msra.mxu0 0
  %123 = vmatprep.subr.bf16.mxu0 0
  %124 = vmatpush2.bf16.msra.mxu0 0
  %125 = vmatprep.subr.bf16.mxu0 0
  %126 = vmatpush2.bf16.msra.mxu0 0
  %127 = vmatprep.subr.bf16.mxu0 0
  %128 = vmatpush2.bf16.msra.mxu0 0
  %129 = vmatprep.subr.bf16.mxu0 0
  %130 = vmatpush2.bf16.msra.mxu0 0
  %131 = vmatprep.mubr.bf16.mxu0 0
  %132 = vmatmul.mubr.bf16.gmra.mxu0 %v43
  %v133 = vpop.f32.mrf.mxu0
  %v134 = vadd.f32 %v21, %v133
  %v135 = vpop.f32.mrf.mxu0
  %v136 = vadd.f32 %v21, %v135
  %v137 = vpop.f32.mrf.mxu0
  %v138 = vpop.f32.mrf.mxu0
  %139 = vdwg.mxu0
  %v140 = vmax.f32 %v93, 0.0
  %v141 = vmax.f32 %v95, 0.0
  %v142 = vmax.f32 %v134, 0.0
  %v143 = vmax.f32 %v136, 0.0
  %v144 = vpack.c.bf16 %v140, %v140
  %v145 = vpack.c.bf16 %v141, %v141
  %v146 = vpack.c.bf16 %v142, %v142
  %v147 = vpack.c.bf16 %v143, %v143
  %v152 = vunpack.c.l.b16 %v144
  %v153 = vunpack.c.l.b16 %v145
  %v154 = vunpack.c.l.b16 %v146
  %v155 = vunpack.c.l.b16 %v147
  %v156 = vpack.c.b16 %v153, %v152
  %v157 = vpack.c.b16 %v155, %v154
  %160 = vst [vmem:[%s3] sm:$0x77] %v156
  %161 = vst [vmem:[%s3 + $0x8] sm:$0x77] %v157
  // Predicated region
  $region14: #{reduction_a_forward.3} parent=0 // pred_check
    _
  $region15: #{reduction_a_forward.3} parent=0 // pred_check_branch
    %163 = sbr.rel (0) target = $region17
  $region16: #{reduction_a_forward.3} parent=0 // pred_region
    _
  $region17: #{reduction_a_forward.3} parent=0 // pred_fallthru
    _
  // Predicated region
  $region18: #{reduction_a_forward.3} parent=0 // pred_check
    _
  $region19: #{reduction_a_forward.3} parent=0 // pred_check_branch
    %165 = sbr.rel (0) target = $region21
  $region20: #{reduction_a_forward.3} parent=0 // pred_region
    _
  $region21: #{reduction_a_forward.3} parent=0 // pred_fallthru
    _

// kernel: reduction_a_forward.4
$region0: #{reduction_a_forward.4}
  #allocation0 [shape = 'u32[]', space=smem, size = 0x4, offset = 0x4, fixed_abs, tag = 'smem constant byte address 0x4 - core index']
  #allocation1 [shape = 'u32[144,128]{1,0:T(1,128)}', space=vmem, size = 0x12000, scoped, tag = 'internal scratch']
  %s0 = inlined_call_operand.vmem [shape: bf16[8,54], index: 0, kind: input, shape index: {}]
  %s1 = inlined_call_operand.vmem [shape: bf16[54,512], index: 1, kind: input, shape index: {}]
  %s2 = inlined_call_operand.vmem [shape: f32[8,1], index: 2, kind: input, shape index: {}]
  %s3 = inlined_call_operand.vmem [shape: bf16[8,512], index: 3, kind: output, shape index: {}]
  %s4 = sld [smem:[#allocation0]]
  $region22: #{reduction_a_forward.4} parent=0
    _
  %s6 = ssub.s32 1, %s4
  %s7 = scalar_select 0, %s6, %s4
  // Predicated region
  $region2: #{reduction_a_forward.4} parent=0 // pred_check
    _
  $region3: #{reduction_a_forward.4} parent=0 // pred_check_branch
    %9 = sbr.rel (0) target = $region5
  $region4: #{reduction_a_forward.4} parent=0 // pred_region
    _
  $region5: #{reduction_a_forward.4} parent=0 // pred_fallthru
    _
  // Predicated region
  $region6: #{reduction_a_forward.4} parent=0 // pred_check
    _
  $region7: #{reduction_a_forward.4} parent=0 // pred_check_branch
    %11 = sbr.rel (0) target = $region9
  $region8: #{reduction_a_forward.4} parent=0 // pred_region
    _
  $region9: #{reduction_a_forward.4} parent=0 // pred_fallthru
    _
  // Predicated region
  $region10: #{reduction_a_forward.4} parent=0 // pred_check
    _
  $region11: #{reduction_a_forward.4} parent=0 // pred_check_branch
    %13 = sbr.rel (0) target = $region13
  $region12: #{reduction_a_forward.4} parent=0 // pred_region
    _
  $region13: #{reduction_a_forward.4} parent=0 // pred_fallthru
    _
  %v15 = vld [vmem:[%s0] sm:$0xf]
  %v16 = vld [vmem:[%s1] sm:$0xff]
  %v17 = vld [vmem:[%s1 + $0x8] sm:$0xff]
  %v18 = vld [vmem:[%s1 + $0x10] sm:$0xff]
  %v19 = vld [vmem:[%s1 + $0x18] sm:$0xff]
  %v20 = vld [vmem:[%s1 + $0x20] sm:$0xff]
  %v21 = vld [vmem:[%s1 + $0x28] sm:$0xff]
  %v22 = vld [vmem:[%s1 + $0x30] sm:$0xff]
  %v23 = vld [vmem:[%s1 + $0x38] sm:$0xff]
  %v24 = vld [vmem:[%s1 + $0x40] sm:$0xff]
  %v25 = vld [vmem:[%s1 + $0x48] sm:$0xff]
  %v26 = vld [vmem:[%s1 + $0x50] sm:$0xff]
  %v27 = vld [vmem:[%s1 + $0x58] sm:$0xff]
  %v28 = vld [vmem:[%s1 + $0x60] sm:$0x77]
  %v29 = vld [vmem:[%s1 + $0x68] sm:$0x77]
  %v30 = vld [vmem:[%s2] sm:$0xff]
  %32 = vset.pattern.permute.xlu0 0
  %33 = vperm.xlu0 %32, %v30
  %v34 = vpop.permute.xlu0 %33
  %v50 = vunpack.c.l.b16 %v16
  %v51 = vunpack.c.h.b16 %v16
  %v52 = vunpack.c.l.b16 %v17
  %v53 = vunpack.c.h.b16 %v17
  %v54 = vunpack.c.l.b16 %v18
  %v55 = vunpack.c.h.b16 %v18
  %v56 = vunpack.c.l.b16 %v19
  %v57 = vunpack.c.h.b16 %v19
  %v58 = vunpack.c.l.b16 %v20
  %v59 = vunpack.c.h.b16 %v20
  %v60 = vunpack.c.l.b16 %v21
  %v61 = vunpack.c.h.b16 %v21
  %v62 = vunpack.c.l.b16 %v22
  %v63 = vunpack.c.h.b16 %v22
  %v64 = vunpack.c.l.b16 %v23
  %v65 = vunpack.c.h.b16 %v23
  %v66 = vunpack.c.l.b16 %v24
  %v67 = vunpack.c.h.b16 %v24
  %v68 = vunpack.c.l.b16 %v25
  %v69 = vunpack.c.h.b16 %v25
  %v70 = vunpack.c.l.b16 %v26
  %v71 = vunpack.c.h.b16 %v26
  %v72 = vunpack.c.l.b16 %v27
  %v73 = vunpack.c.h.b16 %v27
  %v74 = vunpack.c.l.b16 %v28
  %v75 = vunpack.c.h.b16 %v28
  %v76 = vunpack.c.l.b16 %v29
  %v77 = vunpack.c.h.b16 %v29
  %v78 = vpack.c.b16 %v54, %v50
  %v79 = vpack.c.b16 %v55, %v51
  %v80 = vpack.c.b16 %v56, %v52
  %v81 = vpack.c.b16 %v57, %v53
  %v82 = vpack.c.b16 %v62, %v58
  %v83 = vpack.c.b16 %v63, %v59
  %v84 = vpack.c.b16 %v64, %v60
  %v85 = vpack.c.b16 %v65, %v61
  %v86 = vpack.c.b16 %v70, %v66
  %v87 = vpack.c.b16 %v71, %v67
  %v88 = vpack.c.b16 %v72, %v68
  %v89 = vpack.c.b16 %v73, %v69
  %v90 = vpack.c.b16 %v74, %v74
  %v91 = vpack.c.b16 %v75, %v75
  %v92 = vpack.c.b16 %v76, %v76
  %v93 = vpack.c.b16 %v77, %v77
  %vm106 = vcmask 441344
  %v108 = vsel %vm106, %v15, 0
  %vm110 = vcmask 1042432
  %v112 = vsel %vm110, %v90, 0
  %v115 = vsel %vm110, %v91, 0
  %v118 = vsel %vm110, %v92, 0
  %v121 = vsel %vm110, %v93, 0
  %123 = vmatprep.subr.bf16.mxu0 0
  %124 = vmatpush1.bf16.msra.mxu0 0
  %125 = vmatprep.subr.bf16.mxu0 0
  %126 = vmatpush1.bf16.msra.mxu0 0
  %127 = vmatprep.subr.bf16.mxu0 0
  %128 = vmatpush1.bf16.msra.mxu0 0
  %129 = vmatprep.subr.bf16.mxu0 0
  %130 = vmatpush1.bf16.msra.mxu0 0
  %131 = vmatprep.subr.bf16.mxu0 %v115
  %132 = vmatpush1.bf16.msra.mxu0 %v112
  %133 = vmatprep.subr.bf16.mxu0 %v87
  %134 = vmatpush1.bf16.msra.mxu0 %v86
  %135 = vmatprep.subr.bf16.mxu0 %v83
  %136 = vmatpush1.bf16.msra.mxu0 %v82
  %137 = vmatprep.subr.bf16.mxu0 %v79
  %138 = vmatpush1.bf16.msra.mxu0 %v78
  %139 = vmatprep.subr.bf16.mxu0 0
  %140 = vmatpush2.bf16.msra.mxu0 0
  %141 = vmatprep.subr.bf16.mxu0 0
  %142 = vmatpush2.bf16.msra.mxu0 0
  %143 = vmatprep.subr.bf16.mxu0 0
  %144 = vmatpush2.bf16.msra.mxu0 0
  %145 = vmatprep.subr.bf16.mxu0 0
  %146 = vmatpush2.bf16.msra.mxu0 0
  %147 = vmatprep.subr.bf16.mxu0 0
  %148 = vmatpush2.bf16.msra.mxu0 0
  %149 = vmatprep.subr.bf16.mxu0 0
  %150 = vmatpush2.bf16.msra.mxu0 0
  %151 = vmatprep.subr.bf16.mxu0 0
  %152 = vmatpush2.bf16.msra.mxu0 0
  %153 = vmatprep.subr.bf16.mxu0 0
  %154 = vmatpush2.bf16.msra.mxu0 0
  %155 = vmatprep.mubr.bf16.mxu0 0
  %156 = vmatmul.mubr.bf16.gmra.mxu0 %v108
  %v157 = vpop.f32.mrf.mxu0
  %v158 = vadd.f32 %v34, %v157
  %v159 = vpop.f32.mrf.mxu0
  %v160 = vadd.f32 %v34, %v159
  %v161 = vpop.f32.mrf.mxu0
  %v162 = vpop.f32.mrf.mxu0
  %163 = vdwg.mxu0
  %164 = vmatprep.subr.bf16.mxu0 0
  %165 = vmatpush1.bf16.msra.mxu0 0
  %166 = vmatprep.subr.bf16.mxu0 0
  %167 = vmatpush1.bf16.msra.mxu0 0
  %168 = vmatprep.subr.bf16.mxu0 0
  %169 = vmatpush1.bf16.msra.mxu0 0
  %170 = vmatprep.subr.bf16.mxu0 0
  %171 = vmatpush1.bf16.msra.mxu0 0
  %172 = vmatprep.subr.bf16.mxu0 %v121
  %173 = vmatpush1.bf16.msra.mxu0 %v118
  %174 = vmatprep.subr.bf16.mxu0 %v89
  %175 = vmatpush1.bf16.msra.mxu0 %v88
  %176 = vmatprep.subr.bf16.mxu0 %v85
  %177 = vmatpush1.bf16.msra.mxu0 %v84
  %178 = vmatprep.subr.bf16.mxu0 %v81
  %179 = vmatpush1.bf16.msra.mxu0 %v80
  %180 = vmatprep.subr.bf16.mxu0 0
  %181 = vmatpush2.bf16.msra.mxu0 0
  %182 = vmatprep.subr.bf16.mxu0 0
  %183 = vmatpush2.bf16.msra.mxu0 0
  %184 = vmatprep.subr.bf16.mxu0 0
  %185 = vmatpush2.bf16.msra.mxu0 0
  %186 = vmatprep.subr.bf16.mxu0 0
  %187 = vmatpush2.bf16.msra.mxu0 0
  %188 = vmatprep.subr.bf16.mxu0 0
  %189 = vmatpush2.bf16.msra.mxu0 0
  %190 = vmatprep.subr.bf16.mxu0 0
  %191 = vmatpush2.bf16.msra.mxu0 0
  %192 = vmatprep.subr.bf16.mxu0 0
  %193 = vmatpush2.bf16.msra.mxu0 0
  %194 = vmatprep.subr.bf16.mxu0 0
  %195 = vmatpush2.bf16.msra.mxu0 0
  %196 = vmatprep.mubr.bf16.mxu0 0
  %197 = vmatmul.mubr.bf16.gmra.mxu0 %v108
  %v198 = vpop.f32.mrf.mxu0
  %v199 = vadd.f32 %v34, %v198
  %v200 = vpop.f32.mrf.mxu0
  %v201 = vadd.f32 %v34, %v200
  %v202 = vpop.f32.mrf.mxu0
  %v203 = vpop.f32.mrf.mxu0
  %204 = vdwg.mxu0
  %v205 = vmax.f32 %v158, 0.0
  %v206 = vmax.f32 %v160, 0.0
  %v207 = vmax.f32 %v199, 0.0
  %v208 = vmax.f32 %v201, 0.0
  %v209 = vpack.c.bf16 %v205, %v205
  %v210 = vpack.c.bf16 %v206, %v206
  %v211 = vpack.c.bf16 %v207, %v207
  %v212 = vpack.c.bf16 %v208, %v208
  %v217 = vunpack.c.l.b16 %v209
  %v218 = vunpack.c.l.b16 %v210
  %v219 = vunpack.c.l.b16 %v211
  %v220 = vunpack.c.l.b16 %v212
  %v221 = vpack.c.b16 %v218, %v217
  %v222 = vpack.c.b16 %v220, %v219
  %225 = vst [vmem:[%s3] sm:$0xff] %v221
  %226 = vst [vmem:[%s3 + $0x8] sm:$0xff] %v222
  // Predicated region
  $region14: #{reduction_a_forward.4} parent=0 // pred_check
    _
  $region15: #{reduction_a_forward.4} parent=0 // pred_check_branch
    %228 = sbr.rel (0) target = $region17
  $region16: #{reduction_a_forward.4} parent=0 // pred_region
    _
  $region17: #{reduction_a_forward.4} parent=0 // pred_fallthru
    _
  // Predicated region
  $region18: #{reduction_a_forward.4} parent=0 // pred_check
    _
  $region19: #{reduction_a_forward.4} parent=0 // pred_check_branch
    %230 = sbr.rel (0) target = $region21
  $region20: #{reduction_a_forward.4} parent=0 // pred_region
    _
  $region21: #{reduction_a_forward.4} parent=0 // pred_fallthru
    _

// kernel: reduction_a_forward.5
$region0: #{reduction_a_forward.5}
  #allocation0 [shape = 'u32[]', space=smem, size = 0x4, offset = 0x4, fixed_abs, tag = 'smem constant byte address 0x4 - core index']
  #allocation1 [shape = 'u32[144,128]{1,0:T(1,128)}', space=vmem, size = 0x12000, scoped, tag = 'internal scratch']
  %s0 = inlined_call_operand.vmem [shape: bf16[12,72], index: 0, kind: input, shape index: {}]
  %s1 = inlined_call_operand.vmem [shape: bf16[72,128], index: 1, kind: input, shape index: {}]
  %s2 = inlined_call_operand.vmem [shape: f32[12,1], index: 2, kind: input, shape index: {}]
  %s3 = inlined_call_operand.vmem [shape: bf16[12,36], index: 3, kind: input, shape index: {}]
  %s4 = inlined_call_operand.vmem [shape: bf16[36,128], index: 4, kind: input, shape index: {}]
  %s5 = inlined_call_operand.vmem [shape: f32[12,1], index: 5, kind: input, shape index: {}]
  %s6 = inlined_call_operand.vmem [shape: f32[9,4,128], index: 6, kind: input, shape index: {}]
  %s7 = inlined_call_operand.vmem [shape: f32[28,128], index: 7, kind: output, shape index: {}]
  %s8 = sld [smem:[#allocation0]]
  $region38: #{reduction_a_forward.5} parent=0
    _
  %s10 = ssub.s32 1, %s8
  %s11 = scalar_select 0, %s10, %s8
  // Predicated region
  $region2: #{reduction_a_forward.5} parent=0 // pred_check
    _
  $region3: #{reduction_a_forward.5} parent=0 // pred_check_branch
    %13 = sbr.rel (0) target = $region5
  $region4: #{reduction_a_forward.5} parent=0 // pred_region
    _
  $region5: #{reduction_a_forward.5} parent=0 // pred_fallthru
    _
  // Predicated region
  $region6: #{reduction_a_forward.5} parent=0 // pred_check
    _
  $region7: #{reduction_a_forward.5} parent=0 // pred_check_branch
    %15 = sbr.rel (0) target = $region9
  $region8: #{reduction_a_forward.5} parent=0 // pred_region
    _
  $region9: #{reduction_a_forward.5} parent=0 // pred_fallthru
    _
  // Predicated region
  $region10: #{reduction_a_forward.5} parent=0 // pred_check
    _
  $region11: #{reduction_a_forward.5} parent=0 // pred_check_branch
    %17 = sbr.rel (0) target = $region13
  $region12: #{reduction_a_forward.5} parent=0 // pred_region
    _
  $region13: #{reduction_a_forward.5} parent=0 // pred_fallthru
    _
  // Predicated region
  $region14: #{reduction_a_forward.5} parent=0 // pred_check
    _
  $region15: #{reduction_a_forward.5} parent=0 // pred_check_branch
    %19 = sbr.rel (0) target = $region17
  $region16: #{reduction_a_forward.5} parent=0 // pred_region
    _
  $region17: #{reduction_a_forward.5} parent=0 // pred_fallthru
    _
  // Predicated region
  $region18: #{reduction_a_forward.5} parent=0 // pred_check
    _
  $region19: #{reduction_a_forward.5} parent=0 // pred_check_branch
    %21 = sbr.rel (0) target = $region21
  $region20: #{reduction_a_forward.5} parent=0 // pred_region
    _
  $region21: #{reduction_a_forward.5} parent=0 // pred_fallthru
    _
  // Predicated region
  $region22: #{reduction_a_forward.5} parent=0 // pred_check
    _
  $region23: #{reduction_a_forward.5} parent=0 // pred_check_branch
    %23 = sbr.rel (0) target = $region25
  $region24: #{reduction_a_forward.5} parent=0 // pred_region
    _
  $region25: #{reduction_a_forward.5} parent=0 // pred_fallthru
    _
  // Predicated region
  $region26: #{reduction_a_forward.5} parent=0 // pred_check
    _
  $region27: #{reduction_a_forward.5} parent=0 // pred_check_branch
    %25 = sbr.rel (0) target = $region29
  $region28: #{reduction_a_forward.5} parent=0 // pred_region
    _
  $region29: #{reduction_a_forward.5} parent=0 // pred_fallthru
    _
  %v27 = vld [vmem:[%s0] sm:$0xf]
  %v28 = vld [vmem:[%s0 + $0x4] sm:$0x3]
  %v29 = vld [vmem:[%s1] sm:$0xf]
  %v30 = vld [vmem:[%s1 + $0x4] sm:$0xf]
  %v31 = vld [vmem:[%s1 + $0x8] sm:$0xf]
  %v32 = vld [vmem:[%s1 + $0xc] sm:$0xf]
  %v33 = vld [vmem:[%s1 + $0x10] sm:$0xf]
  %v34 = vld [vmem:[%s1 + $0x14] sm:$0xf]
  %v35 = vld [vmem:[%s1 + $0x18] sm:$0xf]
  %v36 = vld [vmem:[%s1 + $0x1c] sm:$0xf]
  %v37 = vld [vmem:[%s1 + $0x20] sm:$0xf]
  %v38 = vld [vmem:[%s2] sm:$0xff]
  %v39 = vld [vmem:[%s2 + $0x8] sm:$0xf]
  %41 = vset.pattern.permute.xlu0 0
  %42 = vperm.xlu0 %41, %v38
  %v43 = vpop.permute.xlu0 %42
  %46 = vset.pattern.permute.xlu0 0
  %47 = vperm.xlu0 %46, %v39
  %v48 = vpop.permute.xlu0 %47
  %v52 = vunpack.c.l.b16 %v27
  %v53 = vunpack.c.l.b16 %v28
  %v54 = vpack.c.b16 %v53, %v52
  %v64 = vunpack.c.l.b16 %v29
  %v65 = vunpack.c.l.b16 %v30
  %v66 = vunpack.c.l.b16 %v31
  %v67 = vunpack.c.l.b16 %v32
  %v68 = vunpack.c.l.b16 %v33
  %v69 = vunpack.c.l.b16 %v34
  %v70 = vunpack.c.l.b16 %v35
  %v71 = vunpack.c.l.b16 %v36
  %v72 = vunpack.c.l.b16 %v37
  %v73 = vpack.c.b16 %v65, %v64
  %v74 = vpack.c.b16 %v67, %v66
  %v75 = vpack.c.b16 %v69, %v68
  %v76 = vpack.c.b16 %v71, %v70
  %v77 = vpack.c.b16 %v72, %v72
  %vm82 = vcmask 588800
  %v84 = vsel %vm82, %v54, 0
  %vm86 = vcmask 1043456
  %v88 = vsel %vm86, %v77, 0
  %90 = vmatprep.subr.bf16.mxu0 0
  %91 = vmatpush1.bf16.msra.mxu0 0
  %92 = vmatprep.subr.bf16.mxu0 0
  %93 = vmatpush1.bf16.msra.mxu0 0
  %94 = vmatprep.subr.bf16.mxu0 0
  %95 = vmatpush1.bf16.msra.mxu0 0
  %96 = vmatprep.subr.bf16.mxu0 0
  %97 = vmatpush1.bf16.msra.mxu0 %v88
  %98 = vmatprep.subr.bf16.mxu0 0
  %99 = vmatpush1.bf16.msra.mxu0 %v76
  %100 = vmatprep.subr.bf16.mxu0 0
  %101 = vmatpush1.bf16.msra.mxu0 %v75
  %102 = vmatprep.subr.bf16.mxu0 0
  %103 = vmatpush1.bf16.msra.mxu0 %v74
  %104 = vmatprep.subr.bf16.mxu0 0
  %105 = vmatpush1.bf16.msra.mxu0 %v73
  %106 = vmatprep.subr.bf16.mxu0 0
  %107 = vmatpush2.bf16.msra.mxu0 0
  %108 = vmatprep.subr.bf16.mxu0 0
  %109 = vmatpush2.bf16.msra.mxu0 0
  %110 = vmatprep.subr.bf16.mxu0 0
  %111 = vmatpush2.bf16.msra.mxu0 0
  %112 = vmatprep.subr.bf16.mxu0 0
  %113 = vmatpush2.bf16.msra.mxu0 0
  %114 = vmatprep.subr.bf16.mxu0 0
  %115 = vmatpush2.bf16.msra.mxu0 0
  %116 = vmatprep.subr.bf16.mxu0 0
  %117 = vmatpush2.bf16.msra.mxu0 0
  %118 = vmatprep.subr.bf16.mxu0 0
  %119 = vmatpush2.bf16.msra.mxu0 0
  %120 = vmatprep.subr.bf16.mxu0 0
  %121 = vmatpush2.bf16.msra.mxu0 0
  %122 = vmatprep.mubr.bf16.mxu0 0
  %123 = vmatmul.mubr.bf16.gmra.mxu0 %v84
  %v124 = vpop.f32.mrf.mxu0
  %v125 = vadd.f32 %v43, %v124
  %v126 = vpop.f32.mrf.mxu0
  %v127 = vpop.f32.mrf.mxu0
  %v128 = vadd.f32 %v48, %v127
  %v129 = vpop.f32.mrf.mxu0
  %130 = vdwg.mxu0
  %v131 = vmax.f32 %v125, 0.0
  %v132 = vmax.f32 %v128, 0.0
  %v133 = vld [vmem:[%s3] sm:$0xf]
  %v134 = vld [vmem:[%s3 + $0x4] sm:$0x3]
  %v135 = vld [vmem:[%s4] sm:$0xf]
  %v136 = vld [vmem:[%s4 + $0x4] sm:$0xf]
  %v137 = vld [vmem:[%s4 + $0x8] sm:$0xf]
  %v138 = vld [vmem:[%s4 + $0xc] sm:$0xf]
  %v139 = vld [vmem:[%s4 + $0x10] sm:$0x3]
  %v140 = vld [vmem:[%s5] sm:$0xff]
  %v141 = vld [vmem:[%s5 + $0x8] sm:$0xf]
  %143 = vset.pattern.permute.xlu0 0
  %144 = vperm.xlu0 %143, %v140
  %v145 = vpop.permute.xlu0 %144
  %148 = vset.pattern.permute.xlu0 0
  %149 = vperm.xlu0 %148, %v141
  %v150 = vpop.permute.xlu0 %149
  %v154 = vunpack.c.l.b16 %v133
  %v155 = vunpack.c.l.b16 %v134
  %v156 = vpack.c.b16 %v155, %v154
  %v162 = vunpack.c.l.b16 %v135
  %v163 = vunpack.c.l.b16 %v136
  %v164 = vunpack.c.l.b16 %v137
  %v165 = vunpack.c.l.b16 %v138
  %v166 = vunpack.c.l.b16 %v139
  %v167 = vpack.c.b16 %v163, %v162
  %v168 = vpack.c.b16 %v165, %v164
  %v169 = vpack.c.b16 %v166, %v166
  %vm172 = vcmask 293888
  %v174 = vsel %vm172, %v156, 0
  %vm176 = vcmask 1041408
  %v178 = vsel %vm176, %v169, 0
  %180 = vmatprep.subr.bf16.mxu0 0
  %181 = vmatpush1.bf16.msra.mxu0 0
  %182 = vmatprep.subr.bf16.mxu0 0
  %183 = vmatpush1.bf16.msra.mxu0 0
  %184 = vmatprep.subr.bf16.mxu0 0
  %185 = vmatpush1.bf16.msra.mxu0 0
  %186 = vmatprep.subr.bf16.mxu0 0
  %187 = vmatpush1.bf16.msra.mxu0 0
  %188 = vmatprep.subr.bf16.mxu0 0
  %189 = vmatpush1.bf16.msra.mxu0 0
  %190 = vmatprep.subr.bf16.mxu0 0
  %191 = vmatpush1.bf16.msra.mxu0 %v178
  %192 = vmatprep.subr.bf16.mxu0 0
  %193 = vmatpush1.bf16.msra.mxu0 %v168
  %194 = vmatprep.subr.bf16.mxu0 0
  %195 = vmatpush1.bf16.msra.mxu0 %v167
  %196 = vmatprep.subr.bf16.mxu0 0
  %197 = vmatpush2.bf16.msra.mxu0 0
  %198 = vmatprep.subr.bf16.mxu0 0
  %199 = vmatpush2.bf16.msra.mxu0 0
  %200 = vmatprep.subr.bf16.mxu0 0
  %201 = vmatpush2.bf16.msra.mxu0 0
  %202 = vmatprep.subr.bf16.mxu0 0
  %203 = vmatpush2.bf16.msra.mxu0 0
  %204 = vmatprep.subr.bf16.mxu0 0
  %205 = vmatpush2.bf16.msra.mxu0 0
  %206 = vmatprep.subr.bf16.mxu0 0
  %207 = vmatpush2.bf16.msra.mxu0 0
  %208 = vmatprep.subr.bf16.mxu0 0
  %209 = vmatpush2.bf16.msra.mxu0 0
  %210 = vmatprep.subr.bf16.mxu0 0
  %211 = vmatpush2.bf16.msra.mxu0 0
  %212 = vmatprep.mubr.bf16.mxu0 0
  %213 = vmatmul.mubr.bf16.gmra.mxu0 %v174
  %v214 = vpop.f32.mrf.mxu0
  %v215 = vadd.f32 %v145, %v214
  %v216 = vpop.f32.mrf.mxu0
  %v217 = vpop.f32.mrf.mxu0
  %v218 = vadd.f32 %v150, %v217
  %v219 = vpop.f32.mrf.mxu0
  %220 = vdwg.mxu0
  %v221 = vmax.f32 %v215, 0.0
  %v222 = vmax.f32 %v218, 0.0
  %v223 = vld [vmem:[%s6] sm:$0xf]
  %s224 = scalar_lea.vmem %s6, 4
  %v225 = vld [vmem:[%s224] sm:$0xf]
  %v226 = vmax.f32 %v223, %v225
  %s227 = scalar_lea.vmem %s6, 8
  %v228 = vld [vmem:[%s227] sm:$0xf]
  %v229 = vmax.f32 %v226, %v228
  %s230 = scalar_lea.vmem %s6, 12
  %v231 = vld [vmem:[%s230] sm:$0xf]
  %v232 = vmax.f32 %v229, %v231
  %s233 = scalar_lea.vmem %s6, 16
  %v234 = vld [vmem:[%s233] sm:$0xf]
  %v235 = vmax.f32 %v232, %v234
  %s236 = scalar_lea.vmem %s6, 20
  %v237 = vld [vmem:[%s236] sm:$0xf]
  %v238 = vmax.f32 %v235, %v237
  %s239 = scalar_lea.vmem %s6, 24
  %v240 = vld [vmem:[%s239] sm:$0xf]
  %v241 = vmax.f32 %v238, %v240
  %s242 = scalar_lea.vmem %s6, 28
  %v243 = vld [vmem:[%s242] sm:$0xf]
  %v244 = vmax.f32 %v241, %v243
  %s245 = scalar_lea.vmem %s6, 32
  %v246 = vld [vmem:[%s245] sm:$0xf]
  %v247 = vmax.f32 %v244, %v246
  %v250 = vrot.slane %v221, 4
  %v251 = vrot.slane %v222, 4
  %v252 = vsel %vm86, %v250, %v251
  %v255 = vsel %vm86, %v132, %v250
  %256 = vst [vmem:[%s7] sm:$0xff] %v131
  %257 = vst [vmem:[%s7 + $0x8] sm:$0xff] %v255
  %258 = vst [vmem:[%s7 + $0x10] sm:$0xff] %v252
  %259 = vst [vmem:[%s7 + $0x18] sm:$0xf] %v247
  // Predicated region
  $region30: #{reduction_a_forward.5} parent=0 // pred_check
    _
  $region31: #{reduction_a_forward.5} parent=0 // pred_check_branch
    %261 = sbr.rel (0) target = $region33
  $region32: #{reduction_a_forward.5} parent=0 // pred_region
    _
  $region33: #{reduction_a_forward.5} parent=0 // pred_fallthru
    _
  // Predicated region
  $region34: #{reduction_a_forward.5} parent=0 // pred_check
    _
  $region35: #{reduction_a_forward.5} parent=0 // pred_check_branch
    %263 = sbr.rel (0) target = $region37
  $region36: #{reduction_a_forward.5} parent=0 // pred_region
    _
  $region37: #{reduction_a_forward.5} parent=0 // pred_fallthru
    _

</llo_original>
